<compile_context>
chip_gen: v7x
topology: tpu7x:2x2x1
jax: 0.10.0
libtpu: 0.0.40
codegen_flags: <defaults>
</compile_context>

<pallas_src>
import math

import jax
import jax.numpy as jnp
from jax.experimental import pallas as pl
from jax.experimental.pallas import tpu as pltpu


def _round_up(v, m):
    return ((v + m - 1) // m) * m


def _tile_defaults():
    """(TM, TK, vmem_limit_bytes) sized per TPU generation."""
    try:
        kind = jax.devices()[0].device_kind.lower()
    except Exception:  # pragma: no cover - defensive
        kind = ""
    if "v5" in kind or "v6" in kind:          # 128 MiB VMEM parts
        return 512, 8192, 96 * 1024 * 1024
    return 256, 4096, 40 * 1024 * 1024        # v7x (64 MiB VMEM) / unknown


def _graphconv_layer_kernel(a_ref, hr_ref, hs_ref, out_ref, acc_ref):
    # a_ref:   [TM, TK] bf16 adjacency tile (dst = row, src = col)
    # hr_ref:  [TK, F]  bf16 projected features (h @ W_rel.T), K-tiled
    # hs_ref:  [TM, F]  f32  self/root term + bias (h @ W_root.T + b), row-tiled
    # out_ref: [TM, F]  f32
    # acc_ref: [TM, F]  f32 accumulator scratch (persists across K steps)
    k = pl.program_id(1)

    @pl.when(k == 0)
    def _():
        acc_ref[...] = jnp.zeros_like(acc_ref)

    acc_ref[...] += jnp.dot(a_ref[...], hr_ref[...],
                            preferred_element_type=jnp.float32)

    @pl.when(k == pl.num_programs(1) - 1)
    def _():
        out_ref[...] = jnp.maximum(acc_ref[...] + hs_ref[...], 0.0)


def _graphconv_layer(adj_bf16, hr_bf16, hs_f32, tm, tk, vmem_limit):
    """One GraphConv + ReLU layer: relu(A @ hr + hs), row- and K-tiled."""
    n_pad, f = hs_f32.shape
    grid = (n_pad // tm, n_pad // tk)
    return pl.pallas_call(
        _graphconv_layer_kernel,
        out_shape=jax.ShapeDtypeStruct((n_pad, f), jnp.float32),
        grid=grid,
        in_specs=[
            pl.BlockSpec((tm, tk), lambda i, k: (i, k)),   # A (streamed)
            pl.BlockSpec((tk, f), lambda i, k: (k, 0)),    # hr (K-tiled)
            pl.BlockSpec((tm, f), lambda i, k: (i, 0)),    # hs (row-tiled)
        ],
        out_specs=pl.BlockSpec((tm, f), lambda i, k: (i, 0)),
        scratch_shapes=[pltpu.VMEM((tm, f), jnp.float32)],
        compiler_params=pltpu.CompilerParams(
            dimension_semantics=("parallel", "arbitrary"),
            vmem_limit_bytes=vmem_limit,
        ),
    )(adj_bf16, hr_bf16, hs_f32)


def gnn_forward(x, edge_index, params, *, tm=None, tk=None):
    """Two-layer GraphConv + ReLU forward.

    x:          [N, F] float32 node features
    edge_index: [2, E] int32 (row 0 = source nodes, row 1 = target nodes)
    params:     dict of w1_rel, w1_root, b1, w2_rel, w2_root, b2
    tm, tk:     row tile (multiple of 8) / reduction tile (multiple of 128)
    """
    n, f = x.shape
    src, dst = edge_index[0], edge_index[1]

    tm_d, tk_d, vmem_limit = _tile_defaults()
    tm = tm_d if tm is None else tm
    tk = tk_d if tk is None else tk

    # ---- glue: pad N to 128 and to lcm(TM, TK), densify the graph in bf16 ----
    n_pad = _round_up(max(n, 128), 128)
    tm = max(8, _round_up(min(tm, n_pad), 8))
    tk = max(128, _round_up(min(tk, n_pad), 128))
    n_pad = _round_up(n_pad, math.lcm(tm, tk))

    # Edge multiplicities are small integers -> exact in bf16.  Padded columns
    # stay zero, so padded rows never leak into real outputs.
    adj = jnp.zeros((n_pad, n_pad), jnp.bfloat16).at[dst, src].add(
        jnp.ones(src.shape, jnp.bfloat16))
    x_pad = jnp.zeros((n_pad, f), jnp.float32).at[:n].set(x)

    h = x_pad
    for wr, ws, b in ((params["w1_rel"], params["w1_root"], params["b1"]),
                      (params["w2_rel"], params["w2_root"], params["b2"])):
        # Hoisted per-node projections (tiny O(N*F^2); XLA fuses them).
        hr = (h @ wr.T).astype(jnp.bfloat16)   # resident operand of A @ hr
        hs = h @ ws.T + b                      # f32 self term + bias
        h = _graphconv_layer(adj, hr, hs, tm, tk, vmem_limit)
    return h[:n]


def _reference(x, edge_index, params):
    """Pure-JAX f32 reference of PyG GraphConv x2 with ReLU."""
    n = x.shape[0]
    src, dst = edge_index[0], edge_index[1]
    adj = jnp.zeros((n, n), jnp.float32).at[dst, src].add(1.0)
    h = x
    for wr, ws, b in ((params["w1_rel"], params["w1_root"], params["b1"]),
                      (params["w2_rel"], params["w2_root"], params["b2"])):
        agg = adj @ h
        h = jnp.maximum(agg @ wr.T + h @ ws.T + b, 0.0)
    return h


if __name__ == "__main__":
    F = 16        # GraphConv(16, 16)
    N = 200       # small graph; pads to 256 -> exercises row and K tiling
    key = jax.random.PRNGKey(0)
    k_x, k_e, k1, k2, k3, k4 = jax.random.split(key, 6)

    # deterministic node features
    x = jax.random.normal(k_x, (N, F), jnp.float32)

    # deterministic edge_index: ring graph + a few extra edges
    ring_src = jnp.arange(N, dtype=jnp.int32)
    ring_dst = (ring_src + 1) % N
    extra_src = jax.random.randint(k_e, (12,), 0, N, dtype=jnp.int32)
    extra_dst = (extra_src + 5) % N
    edge_index = jnp.stack([jnp.concatenate([ring_src, extra_src]),
                            jnp.concatenate([ring_dst, extra_dst])], axis=0)

    # deterministic parameters (GraphConv(16,16): lin_rel has bias, lin_root none)
    scale = 1.0 / jnp.sqrt(jnp.float32(F))
    params = {
        "w1_rel":  jax.random.normal(k1, (F, F), jnp.float32) * scale,
        "w1_root": jax.random.normal(k2, (F, F), jnp.float32) * scale,
        "b1":      jnp.linspace(-0.1, 0.1, F, dtype=jnp.float32).reshape(1, F),
        "w2_rel":  jax.random.normal(k3, (F, F), jnp.float32) * scale,
        "w2_root": jax.random.normal(k4, (F, F), jnp.float32) * scale,
        "b2":      jnp.linspace(0.05, -0.05, F, dtype=jnp.float32).reshape(1, F),
    }

    # tm=8, tk=128 -> grid (32, 2): exercises the parallel row axis and the
    # K-reduction accumulator init/finalize at small N.
    out = jax.block_until_ready(gnn_forward(x, edge_index, params, tm=8, tk=128))
    ref = jax.block_until_ready(_reference(x, edge_index, params))

    assert out.shape == (N, F)
    # bf16 MXU path for A and hr -> relax tolerance vs the pure-f32 reference.
    assert jnp.allclose(out, ref, atol=3e-2, rtol=3e-2), "mismatch vs reference"
    print("KERNEL_OK")
</pallas_src>

<mosaic_0001>
module attributes {stable_mosaic.version = 11 : i64} {
  func.func @_graphconv_layer_kernel(%arg0: i32, %arg1: i32, %arg2: memref<8x128xbf16, #tpu.memory_space<vmem>>, %arg3: memref<128x16xbf16, #tpu.memory_space<vmem>>, %arg4: memref<8x16xf32, #tpu.memory_space<vmem>>, %arg5: memref<8x16xf32, #tpu.memory_space<vmem>>, %arg6: memref<8x16xf32, #tpu.memory_space<vmem>>) attributes {dimension_semantics = [#tpu.dimension_semantics<parallel>, #tpu.dimension_semantics<arbitrary>], iteration_bounds = array<i64: 32, 2>, scalar_prefetch = 0 : i64, scratch_operands = 1 : i64, tpu.core_type = #tpu.core_type<tc>, window_params = [{transform_indices = @transform_0, window_bounds = array<i64: 8, 128>}, {transform_indices = @transform_1, window_bounds = array<i64: 128, 16>}, {transform_indices = @transform_2, window_bounds = array<i64: 8, 16>}, {transform_indices = @transform_3, window_bounds = array<i64: 8, 16>}]} {
    %c0_i32 = arith.constant 0 : i32
    %0 = arith.cmpi eq, %arg1, %c0_i32 : i32
    %1 = arith.extui %0 : i1 to i32
    %c0_i32_0 = arith.constant 0 : i32
    %2 = arith.cmpi ne, %1, %c0_i32_0 : i32
    scf.if %2 {
      %cst_9 = arith.constant 0.000000e+00 : f32
      %12 = vector.broadcast %cst_9 : f32 to vector<8x16xf32>
      %c0_10 = arith.constant 0 : index
      %c0_11 = arith.constant 0 : index
      %13 = vector.load %arg6[%c0_10, %c0_11] : memref<8x16xf32, #tpu.memory_space<vmem>>, vector<8x16xf32>
      tpu.vector_store %arg6[%c0_10, %c0_11], %12 {strides = array<i32>} : memref<8x16xf32, #tpu.memory_space<vmem>>, vector<8x16xf32>,
    } else {
    }
    %c0 = arith.constant 0 : index
    %c0_1 = arith.constant 0 : index
    %3 = vector.load %arg6[%c0, %c0_1] : memref<8x16xf32, #tpu.memory_space<vmem>>, vector<8x16xf32>
    %c0_2 = arith.constant 0 : index
    %c0_3 = arith.constant 0 : index
    %4 = vector.load %arg2[%c0_2, %c0_3] : memref<8x128xbf16, #tpu.memory_space<vmem>>, vector<8x128xbf16>
    %c0_4 = arith.constant 0 : index
    %c0_5 = arith.constant 0 : index
    %5 = vector.load %arg3[%c0_4, %c0_5] : memref<128x16xbf16, #tpu.memory_space<vmem>>, vector<128x16xbf16>
    %cst = arith.constant dense<0.000000e+00> : vector<8x16xf32>
    %6 = tpu.matmul %4, %5, %cst {dimension_numbers = #tpu.dot_dimension_numbers<[1], [0], [0], [1], [0, 0, 1, 1], [], []>} : vector<8x128xbf16>, vector<128x16xbf16>, vector<8x16xf32> -> vector<8x16xf32>
    %7 = arith.addf %3, %6 : vector<8x16xf32>
    %c0_6 = arith.constant 0 : index
    %c0_7 = arith.constant 0 : index
    %8 = vector.load %arg6[%c0_6, %c0_7] : memref<8x16xf32, #tpu.memory_space<vmem>>, vector<8x16xf32>
    tpu.vector_store %arg6[%c0_6, %c0_7], %7 {strides = array<i32>} : memref<8x16xf32, #tpu.memory_space<vmem>>, vector<8x16xf32>,
    %c1_i32 = arith.constant 1 : i32
    %9 = arith.cmpi eq, %arg1, %c1_i32 : i32
    %10 = arith.extui %9 : i1 to i32
    %c0_i32_8 = arith.constant 0 : i32
    %11 = arith.cmpi ne, %10, %c0_i32_8 : i32
    scf.if %11 {
      %c0_9 = arith.constant 0 : index
      %c0_10 = arith.constant 0 : index
      %12 = vector.load %arg6[%c0_9, %c0_10] : memref<8x16xf32, #tpu.memory_space<vmem>>, vector<8x16xf32>
      %c0_11 = arith.constant 0 : index
      %c0_12 = arith.constant 0 : index
      %13 = vector.load %arg4[%c0_11, %c0_12] : memref<8x16xf32, #tpu.memory_space<vmem>>, vector<8x16xf32>
      %14 = arith.addf %12, %13 : vector<8x16xf32>
      %cst_13 = arith.constant 0.000000e+00 : f32
      %15 = vector.broadcast %cst_13 : f32 to vector<8x16xf32>
      %16 = arith.maximumf %14, %15 : vector<8x16xf32>
      %c0_14 = arith.constant 0 : index
      %c0_15 = arith.constant 0 : index
      %17 = vector.load %arg5[%c0_14, %c0_15] : memref<8x16xf32, #tpu.memory_space<vmem>>, vector<8x16xf32>
      tpu.vector_store %arg5[%c0_14, %c0_15], %16 {strides = array<i32>} : memref<8x16xf32, #tpu.memory_space<vmem>>, vector<8x16xf32>,
    } else {
    }
    return
  }
  func.func @transform_0(%arg0: i32, %arg1: i32) -> (i32, i32) {
    %c0_i32 = arith.constant 0 : i32
    return %arg0, %arg1 : i32, i32
  }
  func.func @transform_1(%arg0: i32, %arg1: i32) -> (i32, i32) {
    %c0_i32 = arith.constant 0 : i32
    %c0_i32_0 = arith.constant 0 : i32
    return %arg1, %c0_i32 : i32, i32
  }
  func.func @transform_2(%arg0: i32, %arg1: i32) -> (i32, i32) {
    %c0_i32 = arith.constant 0 : i32
    %c0_i32_0 = arith.constant 0 : i32
    return %arg0, %c0_i32 : i32, i32
  }
  func.func @transform_3(%arg0: i32, %arg1: i32) -> (i32, i32) {
    %c0_i32 = arith.constant 0 : i32
    %c0_i32_0 = arith.constant 0 : i32
    return %arg0, %c0_i32 : i32, i32
  }
}

</mosaic_0001>

<llo_original>
// kernel: tpu_custom_call.1
$region0: #{tpu_custom_call.1}
  #allocation0 [shape = 'u32[]', space=smem, size = 0x4, offset = 0x4, fixed_abs, tag = 'smem constant byte address 0x4 - core index']
  #allocation1 [shape = 'u32[144,128]{1,0:T(1,128)}', space=vmem, size = 0x12000, scoped, tag = 'internal scratch']
  #allocation2 [shape = 'f32[8,16]{1,0:T(8,128)}', space=vmem, size = 0x1000, scoped, tag = 'scratch operand']
  %s0 = inlined_call_operand.vmem [shape: bf16[256,256], index: 0, kind: input, shape index: {}]
  %s1 = inlined_call_operand.vmem [shape: bf16[256,16], index: 1, kind: input, shape index: {}]
  %s2 = inlined_call_operand.vmem [shape: f32[256,16], index: 2, kind: input, shape index: {}]
  %s3 = inlined_call_operand.vmem [shape: f32[256,16], index: 3, kind: output, shape index: {}]
  %s4 = sld [smem:[#allocation0]]
  $region53: #{tpu_custom_call.1} parent=0
    _
  %s6 = ssub.s32 1, %s4
  %s7 = scalar_select 0, %s6, %s4
  loop: start=0, step=1, limit=66
  $region2: #{tpu_custom_call.1} parent=0 // loop_pre_header
    _
  $region3: #{tpu_custom_call.1} parent=0 // loop_header
    %s9 = sphi 0, %s13
    %p10 = scmp.ge.s32.totalorder %s9, 66
    %s16 = sphi 0, %s28
    %s17 = sphi 0, %s24
    %s18 = sphi 0, %s16
    %s19 = sphi 0, %s17
    %s20 = sphi 0, %s18
    %s21 = sphi 0, %s19
    %s33 = sphi 0, %s35
    %s36 = sphi 0, %s33
    %s37 = sphi 0, %s36
    %s53 = sphi 0, %s37
    %s59 = sphi 0, %s61
    %s62 = sphi 0, %s59
    %s63 = sphi 0, %s62
    %s79 = sphi 0, %s63
    %s85 = sphi 0, %s87
    %s88 = sphi 0, %s85
    %s89 = sphi 0, %s88
    %s105 = sphi 0, %s89
    %s111 = sphi 0, %s113
    %s114 = sphi 0, %s111
    %s115 = sphi 0, %s114
    %s131 = sphi 0, %s115
  $region4: #{tpu_custom_call.1} parent=0 // loop_header_branch
    %12 = sbr.rel (%p10) target = $region8
  $region5: #{tpu_custom_call.1} parent=0 // loop_body
    %s14 = ssub.s32 %s9, 1
    %s15 = ssub.s32 %s9, 2
    %s22 = sadd.s32 1, %s17
    %p23 = scmp.ge.s32.totalorder %s22, 2
    %s24 = scalar_select %p23, 0, %s22
    %s25 = sadd.s32 1, %s16
    %s26 = scalar_select %p23, %s25, %s16
    %p27 = scmp.ge.s32.totalorder %s26, 32
    %s28 = scalar_select %p27, 0, %s26
    %s29 = ssub.s32 %s16, %s28
    %s30 = ssub.s32 %s17, %s24
    %s31 = sor.u32 %s29, %s30
    %p32 = scmp.eq.s32.totalorder %s31, 0
    %s34 = sadd.s32 %s33, 1
    %s35 = scalar_select %p32, %s33, %s34
    %p38 = pneg %p32
    %p39 = scmp.eq.s32.totalorder %s9, 63
    %p40 = por %p38, %p39
    %p41 = scmp.ne.s32.totalorder %s33, %s36
    %p42 = scmp.eq.s32.totalorder %s9, 0
    %p43 = por %p41, %p42
    %p44 = scmp.ne.s32.totalorder %s33, %s36
    %p45 = scmp.eq.s32.totalorder %s14, 63
    %p46 = por %p44, %p45
    %p47 = scmp.ne.s32.totalorder %s36, %s37
    %p48 = scmp.eq.s32.totalorder %s14, 0
    %p49 = por %p47, %p48
    %p50 = scmp.ne.s32.totalorder %s36, %s37
    %p51 = scmp.eq.s32.totalorder %s15, 63
    %p52 = por %p50, %p51
    %p54 = scmp.ne.s32.totalorder %s37, %s53
    %p55 = scmp.eq.s32.totalorder %s15, 0
    %p56 = por %p54, %p55
    %s57 = ssub.s32 %s17, %s24
    %p58 = scmp.eq.s32.totalorder %s57, 0
    %s60 = sadd.s32 %s59, 1
    %s61 = scalar_select %p58, %s59, %s60
    %p64 = pneg %p58
    %p65 = scmp.eq.s32.totalorder %s9, 63
    %p66 = por %p64, %p65
    %p67 = scmp.ne.s32.totalorder %s59, %s62
    %p68 = scmp.eq.s32.totalorder %s9, 0
    %p69 = por %p67, %p68
    %p70 = scmp.ne.s32.totalorder %s59, %s62
    %p71 = scmp.eq.s32.totalorder %s14, 63
    %p72 = por %p70, %p71
    %p73 = scmp.ne.s32.totalorder %s62, %s63
    %p74 = scmp.eq.s32.totalorder %s14, 0
    %p75 = por %p73, %p74
    %p76 = scmp.ne.s32.totalorder %s62, %s63
    %p77 = scmp.eq.s32.totalorder %s15, 63
    %p78 = por %p76, %p77
    %p80 = scmp.ne.s32.totalorder %s63, %s79
    %p81 = scmp.eq.s32.totalorder %s15, 0
    %p82 = por %p80, %p81
    %s83 = ssub.s32 %s16, %s28
    %p84 = scmp.eq.s32.totalorder %s83, 0
    %s86 = sadd.s32 %s85, 1
    %s87 = scalar_select %p84, %s85, %s86
    %p90 = pneg %p84
    %p91 = scmp.eq.s32.totalorder %s9, 63
    %p92 = por %p90, %p91
    %p93 = scmp.ne.s32.totalorder %s85, %s88
    %p94 = scmp.eq.s32.totalorder %s9, 0
    %p95 = por %p93, %p94
    %p96 = scmp.ne.s32.totalorder %s85, %s88
    %p97 = scmp.eq.s32.totalorder %s14, 63
    %p98 = por %p96, %p97
    %p99 = scmp.ne.s32.totalorder %s88, %s89
    %p100 = scmp.eq.s32.totalorder %s14, 0
    %p101 = por %p99, %p100
    %p102 = scmp.ne.s32.totalorder %s88, %s89
    %p103 = scmp.eq.s32.totalorder %s15, 63
    %p104 = por %p102, %p103
    %p106 = scmp.ne.s32.totalorder %s89, %s105
    %p107 = scmp.eq.s32.totalorder %s15, 0
    %p108 = por %p106, %p107
    %s109 = ssub.s32 %s16, %s28
    %p110 = scmp.eq.s32.totalorder %s109, 0
    %s112 = sadd.s32 %s111, 1
    %s113 = scalar_select %p110, %s111, %s112
    %p116 = pneg %p110
    %p117 = scmp.eq.s32.totalorder %s9, 63
    %p118 = por %p116, %p117
    %p119 = scmp.ne.s32.totalorder %s111, %s114
    %p120 = scmp.eq.s32.totalorder %s9, 0
    %p121 = por %p119, %p120
    %p122 = scmp.ne.s32.totalorder %s111, %s114
    %p123 = scmp.eq.s32.totalorder %s14, 63
    %p124 = por %p122, %p123
    %p125 = scmp.ne.s32.totalorder %s114, %s115
    %p126 = scmp.eq.s32.totalorder %s14, 0
    %p127 = por %p125, %p126
    %p128 = scmp.ne.s32.totalorder %s114, %s115
    %p129 = scmp.eq.s32.totalorder %s15, 63
    %p130 = por %p128, %p129
    %p132 = scmp.ne.s32.totalorder %s115, %s131
    %p133 = scmp.eq.s32.totalorder %s15, 0
    %p134 = por %p132, %p133
    %p135 = scmp.le.s32.totalorder 1, %s9
    %p136 = scmp.lt.s32.totalorder %s9, 65
    %p137 = pnand %p135, %p136
    %p138 = pneg %p137
    // Predicated region
    $region9: #{tpu_custom_call.1} parent=5 // pred_check
      _
    $region10: #{tpu_custom_call.1} parent=5 // pred_check_branch
      %140 = sbr.rel (%p137) target = $region12
    $region11: #{tpu_custom_call.1} parent=5 // pred_region
      %s141 = ssub.s32 %s9, 1
    $region12: #{tpu_custom_call.1} parent=5 // pred_fallthru
      _
    %p142 = scmp.lt.s32.totalorder %s9, 64
    // Predicated region
    $region13: #{tpu_custom_call.1} parent=5 // pred_check
      %p143 = pneg %p142
    $region14: #{tpu_custom_call.1} parent=5 // pred_check_branch
      %145 = sbr.rel (%p143) target = $region16
    $region15: #{tpu_custom_call.1} parent=5 // pred_region
      // Predicated region
      $region17: #{tpu_custom_call.1} parent=15 // pred_check
        %p146 = pneg %p43
      $region18: #{tpu_custom_call.1} parent=15 // pred_check_branch
        %148 = sbr.rel (%p146) target = $region20
      $region19: #{tpu_custom_call.1} parent=15 // pred_region
        %p149 = scmp.lt.s32.totalorder %s16, 31
        %s150 = scalar_select %p149, %s16, 31
        %p151 = scmp.lt.s32.totalorder %s17, 1
        %s152 = scalar_select %p151, %s17, 1
        %s153 = smul.addr %s150, 2
        %s154 = sadd.s32 %s152, %s153
        %s155 = smul.addr %s154, 4
        %s156 = scalar_lea.vmem %s0, %s155
      $region20: #{tpu_custom_call.1} parent=15 // pred_fallthru
        _
      // Predicated region
      $region21: #{tpu_custom_call.1} parent=15 // pred_check
        %p157 = pneg %p69
      $region22: #{tpu_custom_call.1} parent=15 // pred_check_branch
        %159 = sbr.rel (%p157) target = $region24
      $region23: #{tpu_custom_call.1} parent=15 // pred_region
        %s160 = smul.u32 16, %s17
        %p161 = scmp.lt.s32.totalorder %s160, 31
        %s162 = scalar_select %p161, %s160, 31
        %s163 = smul.addr %s162, 4
        %s164 = scalar_lea.vmem %s1, %s163
        %s165 = smul.u32 16, %s17
      $region24: #{tpu_custom_call.1} parent=15 // pred_fallthru
        _
      // Predicated region
      $region25: #{tpu_custom_call.1} parent=15 // pred_check
        %p166 = pneg %p95
      $region26: #{tpu_custom_call.1} parent=15 // pred_check_branch
        %168 = sbr.rel (%p166) target = $region28
      $region27: #{tpu_custom_call.1} parent=15 // pred_region
        %p169 = scmp.lt.s32.totalorder %s16, 31
        %s170 = scalar_select %p169, %s16, 31
        %s171 = smul.addr %s170, 8
        %s172 = scalar_lea.vmem %s2, %s171
      $region28: #{tpu_custom_call.1} parent=15 // pred_fallthru
        _
    $region16: #{tpu_custom_call.1} parent=5 // pred_fallthru
      _
    %p173 = scmp.le.s32.totalorder 1, %s9
    %p174 = scmp.lt.s32.totalorder %s9, 65
    %p175 = pnand %p173, %p174
    %p176 = pneg %p175
    // Predicated region
    $region29: #{tpu_custom_call.1} parent=5 // pred_check
      _
    $region30: #{tpu_custom_call.1} parent=5 // pred_check_branch
      %178 = sbr.rel (%p175) target = $region32
    $region31: #{tpu_custom_call.1} parent=5 // pred_region
      %s179 = ssub.s32 %s9, 1
      %p180 = scmp.lt.s32.totalorder %s18, 31
      %s181 = scalar_select %p180, %s18, 31
      %p182 = scmp.lt.s32.totalorder %s19, 1
      %s183 = scalar_select %p182, %s19, 1
      %s184 = smul.addr %s181, 2
      %s185 = sadd.s32 %s183, %s184
      %s186 = smul.addr %s185, 4
      %s187 = scalar_lea.vmem %s0, %s186
      %p188 = pneg %p49
      %p189 = pneg %p46
      %s190 = smul.u32 16, %s19
      %p191 = scmp.lt.s32.totalorder %s190, 31
      %s192 = scalar_select %p191, %s190, 31
      %s193 = smul.addr %s192, 4
      %s194 = scalar_lea.vmem %s1, %s193
      %p195 = pneg %p75
      %p196 = pneg %p72
      %p197 = scmp.lt.s32.totalorder %s18, 31
      %s198 = scalar_select %p197, %s18, 31
      %s199 = smul.addr %s198, 8
      %s200 = scalar_lea.vmem %s2, %s199
      %p201 = pneg %p101
      %p202 = pneg %p98
      %p203 = pneg %p127
      %p204 = pneg %p124
      %p205 = scmp.lt.s32.totalorder %s18, 31
      %s206 = scalar_select %p205, %s18, 31
      %s207 = smul.addr %s206, 8
      %s208 = scalar_lea.vmem %s3, %s207
      %p209 = scmp.lt.s32.totalorder %s18, 31
      %s210 = scalar_select %p209, %s18, 31
      %p211 = scmp.lt.s32.totalorder %s19, 1
      %s212 = scalar_select %p211, %s19, 1
      %s213 = smul.addr %s210, 2
      %s214 = sadd.s32 %s212, %s213
      %s215 = smul.addr %s214, 4
      %s216 = scalar_lea.vmem %s0, %s215
      %s217 = smul.u32 16, %s19
      %p218 = scmp.lt.s32.totalorder %s217, 31
      %s219 = scalar_select %p218, %s217, 31
      %s220 = smul.addr %s219, 4
      %s221 = scalar_lea.vmem %s1, %s220
      %s222 = smul.u32 16, %s19
      %p223 = scmp.lt.s32.totalorder %s18, 31
      %s224 = scalar_select %p223, %s18, 31
      %s225 = smul.addr %s224, 8
      %s226 = scalar_lea.vmem %s2, %s225
      %p227 = scmp.lt.s32.totalorder %s18, 31
      %s228 = scalar_select %p227, %s18, 31
      %s229 = smul.addr %s228, 8
      %s230 = scalar_lea.vmem %s3, %s229
      %p232 = scmp.eq.s32.totalorder %s19, 0
      // Predicated region
      $region33: #{tpu_custom_call.1} parent=31 // pred_check
        %p233 = pneg %p232
      $region34: #{tpu_custom_call.1} parent=31 // pred_check_branch
        %235 = sbr.rel (%p233) target = $region36
      $region35: #{tpu_custom_call.1} parent=31 // pred_region
        %vm236 = vcmask 130048
        %237 = vst.msk [vmem:[#allocation2] sm:$0xff] %vm236, 0.0
      $region36: #{tpu_custom_call.1} parent=31 // pred_fallthru
        _
      %v238 = vld [vmem:[#allocation2] sm:$0xff]
      %v239 = vld [vmem:[%s216] sm:$0xf]
      %v240 = vld [vmem:[%s221] sm:$0xf]
      %v241 = vld [vmem:[%s221 + $0x4] sm:$0xf]
      %v242 = vld [vmem:[%s221 + $0x8] sm:$0xf]
      %v243 = vld [vmem:[%s221 + $0xc] sm:$0xf]
      %v244 = vld [vmem:[%s221 + $0x10] sm:$0xf]
      %v245 = vld [vmem:[%s221 + $0x14] sm:$0xf]
      %v246 = vld [vmem:[%s221 + $0x18] sm:$0xf]
      %v247 = vld [vmem:[%s221 + $0x1c] sm:$0xf]
      %v248 = vld [vmem:[%s221 + $0x20] sm:$0xf]
      %v249 = vld [vmem:[%s221 + $0x24] sm:$0xf]
      %v250 = vld [vmem:[%s221 + $0x28] sm:$0xf]
      %v251 = vld [vmem:[%s221 + $0x2c] sm:$0xf]
      %v252 = vld [vmem:[%s221 + $0x30] sm:$0xf]
      %v253 = vld [vmem:[%s221 + $0x34] sm:$0xf]
      %v254 = vld [vmem:[%s221 + $0x38] sm:$0xf]
      %v255 = vld [vmem:[%s221 + $0x3c] sm:$0xf]
      %v272 = vunpack.c.l.b16 %v240
      %v273 = vunpack.c.l.b16 %v241
      %v274 = vunpack.c.l.b16 %v242
      %v275 = vunpack.c.l.b16 %v243
      %v276 = vunpack.c.l.b16 %v244
      %v277 = vunpack.c.l.b16 %v245
      %v278 = vunpack.c.l.b16 %v246
      %v279 = vunpack.c.l.b16 %v247
      %v280 = vunpack.c.l.b16 %v248
      %v281 = vunpack.c.l.b16 %v249
      %v282 = vunpack.c.l.b16 %v250
      %v283 = vunpack.c.l.b16 %v251
      %v284 = vunpack.c.l.b16 %v252
      %v285 = vunpack.c.l.b16 %v253
      %v286 = vunpack.c.l.b16 %v254
      %v287 = vunpack.c.l.b16 %v255
      %v288 = vpack.c.b16 %v273, %v272
      %v289 = vpack.c.b16 %v275, %v274
      %v290 = vpack.c.b16 %v277, %v276
      %v291 = vpack.c.b16 %v279, %v278
      %v292 = vpack.c.b16 %v281, %v280
      %v293 = vpack.c.b16 %v283, %v282
      %v294 = vpack.c.b16 %v285, %v284
      %v295 = vpack.c.b16 %v287, %v286
      %304 = vmatprep.subr.bf16.mxu0 0
      %305 = vmatpush1.bf16.msra.mxu0 %v288
      %306 = vmatprep.subr.bf16.mxu0 0
      %307 = vmatpush1.bf16.msra.mxu0 %v289
      %308 = vmatprep.subr.bf16.mxu0 0
      %309 = vmatpush1.bf16.msra.mxu0 %v290
      %310 = vmatprep.subr.bf16.mxu0 0
      %311 = vmatpush1.bf16.msra.mxu0 %v291
      %312 = vmatprep.subr.bf16.mxu0 0
      %313 = vmatpush1.bf16.msra.mxu0 %v292
      %314 = vmatprep.subr.bf16.mxu0 0
      %315 = vmatpush1.bf16.msra.mxu0 %v293
      %316 = vmatprep.subr.bf16.mxu0 0
      %317 = vmatpush1.bf16.msra.mxu0 %v294
      %318 = vmatprep.subr.bf16.mxu0 0
      %319 = vmatpush1.bf16.msra.mxu0 %v295
      %320 = vmatprep.subr.bf16.mxu0 0
      %321 = vmatpush1.bf16.msra.mxu0 0
      %322 = vmatprep.subr.bf16.mxu0 0
      %323 = vmatpush1.bf16.msra.mxu0 0
      %324 = vmatprep.subr.bf16.mxu0 0
      %325 = vmatpush1.bf16.msra.mxu0 0
      %326 = vmatprep.subr.bf16.mxu0 0
      %327 = vmatpush1.bf16.msra.mxu0 0
      %328 = vmatprep.subr.bf16.mxu0 0
      %329 = vmatpush1.bf16.msra.mxu0 0
      %330 = vmatprep.subr.bf16.mxu0 0
      %331 = vmatpush1.bf16.msra.mxu0 0
      %332 = vmatprep.subr.bf16.mxu0 0
      %333 = vmatpush1.bf16.msra.mxu0 0
      %334 = vmatprep.subr.bf16.mxu0 0
      %335 = vmatpush1.bf16.msra.mxu0 0
      %336 = vmatprep.mubr.bf16.mxu0 0
      %337 = vmatmul.mubr.bf16.gmra.mrb[0].mxu0 %v239
      %v338 = vpop.f32.mrb[0].mxu0
      %v339 = vadd.f32 0.0, %v338
      %v340 = vpop.f32.mrb[0].mxu0
      %v341 = vpop.f32.mrb[0].mxu0
      %v342 = vpop.f32.mrb[0].mxu0
      %343 = vdwg.mxu0
      %v344 = vadd.f32 %v238, %v339
      %vm345 = vcmask 130048
      %346 = vst.msk [vmem:[#allocation2] sm:$0xff] %vm345, %v344
      %p347 = scmp.eq.s32.totalorder %s19, 1
      // Predicated region
      $region37: #{tpu_custom_call.1} parent=31 // pred_check
        %p348 = pneg %p347
      $region38: #{tpu_custom_call.1} parent=31 // pred_check_branch
        %350 = sbr.rel (%p348) target = $region40
      $region39: #{tpu_custom_call.1} parent=31 // pred_region
        %v351 = vld [vmem:[#allocation2] sm:$0xff]
        %v352 = vld [vmem:[%s226] sm:$0xff]
        %v353 = vadd.f32 %v351, %v352
        %v354 = vmax.f32 %v353, 0.0
        %355 = vst.msk [vmem:[%s230] sm:$0xff] %vm345, %v354
      $region40: #{tpu_custom_call.1} parent=31 // pred_fallthru
        _
      %p356 = scmp.lt.s32.totalorder %s18, 31
      %s357 = scalar_select %p356, %s18, 31
      %s358 = smul.addr %s357, 8
      %s359 = scalar_lea.vmem %s3, %s358
      // Predicated region
      $region41: #{tpu_custom_call.1} parent=31 // pred_check
        %p360 = pneg %p124
      $region42: #{tpu_custom_call.1} parent=31 // pred_check_branch
        %362 = sbr.rel (%p360) target = $region44
      $region43: #{tpu_custom_call.1} parent=31 // pred_region
        _
      $region44: #{tpu_custom_call.1} parent=31 // pred_fallthru
        _
    $region32: #{tpu_custom_call.1} parent=5 // pred_fallthru
      _
    %p363 = scmp.le.s32.totalorder 2, %s9
    // Predicated region
    $region45: #{tpu_custom_call.1} parent=5 // pred_check
      %p364 = pneg %p363
    $region46: #{tpu_custom_call.1} parent=5 // pred_check_branch
      %366 = sbr.rel (%p364) target = $region48
    $region47: #{tpu_custom_call.1} parent=5 // pred_region
      %s367 = ssub.s32 %s9, 2
      // Predicated region
      $region49: #{tpu_custom_call.1} parent=47 // pred_check
        %p368 = pneg %p130
      $region50: #{tpu_custom_call.1} parent=47 // pred_check_branch
        %370 = sbr.rel (%p368) target = $region52
      $region51: #{tpu_custom_call.1} parent=47 // pred_region
        %p371 = scmp.lt.s32.totalorder %s20, 31
        %s372 = scalar_select %p371, %s20, 31
        %s373 = smul.addr %s372, 8
        %s374 = scalar_lea.vmem %s3, %s373
      $region52: #{tpu_custom_call.1} parent=47 // pred_fallthru
        _
    $region48: #{tpu_custom_call.1} parent=5 // pred_fallthru
      _
  $region6: #{tpu_custom_call.1} parent=0 // loop_footer
    %s13 = sadd.s32 1, %s9
  $region7: #{tpu_custom_call.1} parent=0 // loop_footer_branch
    %8 = sbr.rel target = $region3
  $region8: #{tpu_custom_call.1} parent=0 // loop_exit
    _

</llo_original>
